<compile_context>
chip_gen: v5e
topology: v5e:2x2
jax: 0.10.0
libtpu: 0.0.40
codegen_flags: <defaults>
</compile_context>

<pallas_src>
import jax
import jax.numpy as jnp
from jax import lax
from jax.experimental import pallas as pl
from jax.experimental.pallas import tpu as pltpu


def _round_up(x, m):
    return ((x + m - 1) // m) * m


def _make_gram_sums_kernel(num_col_blocks):
    """Builds the kernel body with the static number of column blocks baked in."""

    def kernel(i_idx_ref, j_idx_ref,            # scalar prefetch (SMEM)
               xrow_ref, xcolT_ref,             # (TM, D) bf16, (D, TN) bf16
               labr_ref, labc_ref,              # (TM, 1) int32, (1, TN) int32
               out_ref,                         # (1, 8, 128) f32
               acc_all_ref, acc_match_ref):     # (TM, 1) f32 VMEM scratch
        t = pl.program_id(0)
        i = i_idx_ref[t]
        j = j_idx_ref[t]

        # First tile of row-block group i is always the diagonal tile (j == i).
        @pl.when(j == i)
        def _init():
            acc_all_ref[...] = jnp.zeros_like(acc_all_ref)
            acc_match_ref[...] = jnp.zeros_like(acc_match_ref)

        # MXU: canonical (TM, D) x (D, TN), bf16 inputs, f32 accumulation.
        mat = lax.dot_general(xrow_ref[...], xcolT_ref[...],
                              (((1,), (0,)), ((), ())),
                              preferred_element_type=jnp.float32)

        # Same-label mask for this tile from tiny (TM,1)/(1,TN) label blocks.
        matches = (labr_ref[...] == labc_ref[...]).astype(jnp.float32)

        # Off-diagonal tile (i < j) also stands for its mirrored tile (j, i);
        # the gram matrix and the label mask are symmetric, so weight by 2.
        w = jnp.where(i == j, jnp.float32(1.0), jnp.float32(2.0))
        acc_all_ref[...] += w * jnp.sum(mat, axis=1, keepdims=True)
        acc_match_ref[...] += w * jnp.sum(mat * matches, axis=1, keepdims=True)

        # Last tile of row-block group i is always j == num_col_blocks - 1.
        @pl.when(j == num_col_blocks - 1)
        def _finalize():
            s_all = jnp.sum(acc_all_ref[...])
            s_match = jnp.sum(acc_match_ref[...])
            # Lane-dense (8,128) output tile: sublane 0 = sum(mat), 1 = matched sum.
            sub = lax.broadcasted_iota(jnp.int32, (8, 128), 0)
            out_ref[0] = jnp.where(sub == 0, s_all,
                          jnp.where(sub == 1, s_match, jnp.float32(0.0)))

    return kernel


def base_metric_loss_forward(embeddings, labels, *, tile=512):
    """Pallas-backed BaseMetricLossFunction.forward (DotProductSimilarity + MeanReducer).

    Returns (loss, pos_pair_mean, neg_pair_mean).
    bf16 MXU inputs limit per-entry similarity precision to ~1e-3; suitable for
    loss computation (validated at atol=2e-2 against an f32 reference).
    """
    if embeddings.shape[0] != labels.shape[0]:
        raise ValueError("Number of embeddings must equal number of labels")
    if labels.ndim != 1:
        raise ValueError("labels must be a 1D tensor of shape (batch_size,)")
    if tile % 128 != 0:
        raise ValueError("tile must be a multiple of 128")

    n, d = embeddings.shape

    # --- wrapper-side prologue: normalize once, O(N*D) -------------------------
    # F.normalize(p=2, dim=1): x * rsqrt(max(||x||^2, 1e-24)) == x / max(||x||, 1e-12)
    x = embeddings.astype(jnp.float32)
    ss = jnp.sum(x * x, axis=1, keepdims=True)
    xn16 = (x * lax.rsqrt(jnp.maximum(ss, 1e-24))).astype(jnp.bfloat16)
    # Trace of the gram matrix, from the same bf16 values the MXU consumes.
    trace = jnp.sum(jnp.square(xn16.astype(jnp.float32)))

    # --- padding / tiling -------------------------------------------------------
    n8 = _round_up(n, 8)
    tm = n8 if n8 <= tile else tile           # (8,128)-legal: full array or 128-multiple
    n_pad = _round_up(n, tm)
    pad = n_pad - n

    # Zero-padded rows are zero vectors -> contribute 0 to every similarity sum,
    # so their label values are irrelevant (pad with 0; counts use real labels only).
    xn_p = jnp.pad(xn16, ((0, pad), (0, 0)))
    xnT_p = xn_p.T                            # (D, N_pad) bf16, MXU-canonical column operand
    lab_i32 = labels.astype(jnp.int32)
    lab_p = jnp.pad(lab_i32, (0, pad))
    lab_col = lab_p.reshape(n_pad, 1)
    lab_row = lab_p.reshape(1, n_pad)

    nb = n_pad // tm
    ii, jj = [], []
    for a in range(nb):                       # packed upper-triangular tile list, grouped by row block
        for b in range(a, nb):
            ii.append(a)
            jj.append(b)
    i_idx = jnp.asarray(ii, dtype=jnp.int32)
    j_idx = jnp.asarray(jj, dtype=jnp.int32)
    num_tiles = len(ii)

    partials = pl.pallas_call(
        _make_gram_sums_kernel(nb),
        out_shape=jax.ShapeDtypeStruct((nb, 8, 128), jnp.float32),
        grid_spec=pltpu.PrefetchScalarGridSpec(
            num_scalar_prefetch=2,
            grid=(num_tiles,),
            in_specs=[
                pl.BlockSpec((tm, d), lambda t, ir, jr: (ir[t], 0)),   # row embedding block (bf16)
                pl.BlockSpec((d, tm), lambda t, ir, jr: (0, jr[t])),   # column block, pre-transposed (bf16)
                pl.BlockSpec((tm, 1), lambda t, ir, jr: (ir[t], 0)),   # labels (column vector)
                pl.BlockSpec((1, tm), lambda t, ir, jr: (0, jr[t])),   # labels (row vector)
            ],
            out_specs=pl.BlockSpec((1, 8, 128), lambda t, ir, jr: (ir[t], 0, 0)),
            scratch_shapes=[
                pltpu.VMEM((tm, 1), jnp.float32),    # row-wise sum(mat) accumulator
                pltpu.VMEM((tm, 1), jnp.float32),    # row-wise sum(mat | same label) accumulator
            ],
        ),
        compiler_params=pltpu.CompilerParams(
            # 1-D packed-triangular grid with a running accumulator -> reduction axis.
            dimension_semantics=("arbitrary",),
            vmem_limit_bytes=48 * 1024 * 1024,   # headroom under v7x's 64 MiB per-TC VMEM
        ),
    )(i_idx, j_idx, xn_p, xnT_p, lab_col, lab_row)

    all_sum = jnp.sum(partials[:, 0, 0])      # sum over ALL ordered pairs (incl. diagonal)
    match_sum = jnp.sum(partials[:, 1, 0])    # sum over same-label ordered pairs (incl. diagonal)

    # --- label-only pair counts, computed outside the kernel (O(N log N)) ------
    s = jnp.sort(lab_i32)
    run_len = (jnp.searchsorted(s, s, side="right")
               - jnp.searchsorted(s, s, side="left"))
    same_cnt = jnp.sum(run_len)               # = sum_l count_l^2   (incl. diagonal)
    pos_cnt = same_cnt - n                    # off-diagonal same-label pairs
    neg_cnt = n * n - same_cnt                # different-label pairs

    pos_sum = match_sum - trace               # remove the diagonal
    neg_sum = all_sum - match_sum

    pos_cnt_f = pos_cnt.astype(jnp.float32)
    neg_cnt_f = neg_cnt.astype(jnp.float32)
    pos_mean = jnp.where(pos_cnt > 0, pos_sum / jnp.maximum(pos_cnt_f, 1.0), 0.0)
    neg_mean = jnp.where(neg_cnt > 0, neg_sum / jnp.maximum(neg_cnt_f, 1.0), 0.0)

    # compute_loss: if all pair-index lists have <= 1 element -> zero_losses()
    # -> reducer returns sum(embeddings * 0) == 0.  (Exactly the spec's condition.)
    degenerate = jnp.logical_and(pos_cnt <= 1, neg_cnt <= 1)

    # TODO(synk): _compute_loss is abstract; identity pass-through -> final loss
    # is the MeanReducer mean over positive-pair similarities.
    loss = jnp.where(degenerate, 0.0, pos_mean)
    return loss, pos_mean, neg_mean


def _reference_jax(embeddings, labels):
    """Pure-JAX (f32) reference mirroring the PyTorch semantics."""
    x = embeddings.astype(jnp.float32)
    xn = x / jnp.maximum(jnp.linalg.norm(x, axis=1, keepdims=True), 1e-12)
    mat = xn @ xn.T
    matches = labels[:, None] == labels[None, :]
    n = labels.shape[0]
    eye = jnp.eye(n, dtype=bool)
    pos_mask = jnp.logical_and(matches, ~eye)
    neg_mask = ~matches
    pos_cnt = jnp.sum(pos_mask)
    neg_cnt = jnp.sum(neg_mask)
    pos_mean = jnp.sum(jnp.where(pos_mask, mat, 0.0)) / jnp.maximum(pos_cnt, 1)
    neg_mean = jnp.sum(jnp.where(neg_mask, mat, 0.0)) / jnp.maximum(neg_cnt, 1)
    return pos_mean, neg_mean


if __name__ == "__main__":
    key = jax.random.PRNGKey(0)
    k1, k2, k3 = jax.random.split(key, 3)

    # Test 1: small shapes matching the module's documented usage (single tile).
    N1, D1 = 8, 32
    emb1 = jax.random.normal(k1, (N1, D1), dtype=jnp.float32)
    lab1 = jnp.array([0, 0, 1, 1, 2, 2, 3, 3], dtype=jnp.int32)
    loss1, pm1, nm1 = base_metric_loss_forward(emb1, lab1)
    loss1 = jax.block_until_ready(loss1)
    rp1, rn1 = _reference_jax(emb1, lab1)
    assert jnp.allclose(pm1, rp1, atol=2e-2), (pm1, rp1)
    assert jnp.allclose(nm1, rn1, atol=2e-2), (nm1, rn1)
    assert jnp.allclose(loss1, rp1, atol=2e-2), (loss1, rp1)

    # Test 2: exercises the packed upper-triangular tile grid and the padding path.
    N2, D2 = 300, 64
    emb2 = jax.random.normal(k2, (N2, D2), dtype=jnp.float32)
    lab2 = jax.random.randint(k3, (N2,), 0, 6, dtype=jnp.int32)
    loss2, pm2, nm2 = base_metric_loss_forward(emb2, lab2, tile=128)
    loss2 = jax.block_until_ready(loss2)
    rp2, rn2 = _reference_jax(emb2, lab2)
    assert jnp.allclose(pm2, rp2, atol=2e-2), (pm2, rp2)
    assert jnp.allclose(nm2, rn2, atol=2e-2), (nm2, rn2)
    assert jnp.allclose(loss2, rp2, atol=2e-2), (loss2, rp2)

    print("KERNEL_OK")
</pallas_src>

<mosaic_0001>
module attributes {stable_mosaic.version = 11 : i64} {
  func.func @kernel(%arg0: i32, %arg1: memref<1xi32, #tpu.memory_space<smem>>, %arg2: memref<1xi32, #tpu.memory_space<smem>>, %arg3: memref<8x32xbf16, #tpu.memory_space<vmem>>, %arg4: memref<32x8xbf16, #tpu.memory_space<vmem>>, %arg5: memref<8x1xi32, #tpu.memory_space<vmem>>, %arg6: memref<1x8xi32, #tpu.memory_space<vmem>>, %arg7: memref<1x8x128xf32, #tpu.memory_space<vmem>>, %arg8: memref<8x1xf32, #tpu.memory_space<vmem>>, %arg9: memref<8x1xf32, #tpu.memory_space<vmem>>) attributes {dimension_semantics = [#tpu.dimension_semantics<arbitrary>], iteration_bounds = array<i64: 1>, scalar_prefetch = 2 : i64, scratch_operands = 2 : i64, tpu.core_type = #tpu.core_type<tc>, window_params = [{transform_indices = @transform_0, window_bounds = array<i64: 8, 32>}, {transform_indices = @transform_1, window_bounds = array<i64: 32, 8>}, {transform_indices = @transform_2, window_bounds = array<i64: 8, 1>}, {transform_indices = @transform_3, window_bounds = array<i64: 1, 8>}, {transform_indices = @transform_4, window_bounds = array<i64: 1, 8, 128>}]} {
    %0 = arith.index_cast %arg0 : i32 to index
    %1 = memref.load %arg1[%0] : memref<1xi32, #tpu.memory_space<smem>>
    %2 = arith.index_cast %arg0 : i32 to index
    %3 = memref.load %arg2[%2] : memref<1xi32, #tpu.memory_space<smem>>
    %4 = arith.cmpi eq, %3, %1 : i32
    %5 = arith.extui %4 : i1 to i32
    %c0_i32 = arith.constant 0 : i32
    %6 = arith.cmpi ne, %5, %c0_i32 : i32
    scf.if %6 {
      %cst_21 = arith.constant 0.000000e+00 : f32
      %37 = vector.broadcast %cst_21 : f32 to vector<8x1xf32>
      %c0_22 = arith.constant 0 : index
      %c0_23 = arith.constant 0 : index
      %38 = vector.load %arg8[%c0_22, %c0_23] : memref<8x1xf32, #tpu.memory_space<vmem>>, vector<8x1xf32>
      tpu.vector_store %arg8[%c0_22, %c0_23], %37 {strides = array<i32>} : memref<8x1xf32, #tpu.memory_space<vmem>>, vector<8x1xf32>,
      %cst_24 = arith.constant 0.000000e+00 : f32
      %39 = vector.broadcast %cst_24 : f32 to vector<8x1xf32>
      %c0_25 = arith.constant 0 : index
      %c0_26 = arith.constant 0 : index
      %40 = vector.load %arg9[%c0_25, %c0_26] : memref<8x1xf32, #tpu.memory_space<vmem>>, vector<8x1xf32>
      tpu.vector_store %arg9[%c0_25, %c0_26], %39 {strides = array<i32>} : memref<8x1xf32, #tpu.memory_space<vmem>>, vector<8x1xf32>,
    } else {
    }
    %c0 = arith.constant 0 : index
    %c0_0 = arith.constant 0 : index
    %7 = vector.load %arg3[%c0, %c0_0] : memref<8x32xbf16, #tpu.memory_space<vmem>>, vector<8x32xbf16>
    %c0_1 = arith.constant 0 : index
    %c0_2 = arith.constant 0 : index
    %8 = vector.load %arg4[%c0_1, %c0_2] : memref<32x8xbf16, #tpu.memory_space<vmem>>, vector<32x8xbf16>
    %cst = arith.constant dense<0.000000e+00> : vector<8x8xf32>
    %9 = tpu.matmul %7, %8, %cst {dimension_numbers = #tpu.dot_dimension_numbers<[1], [0], [0], [1], [0, 0, 1, 1], [], []>} : vector<8x32xbf16>, vector<32x8xbf16>, vector<8x8xf32> -> vector<8x8xf32>
    %c0_3 = arith.constant 0 : index
    %c0_4 = arith.constant 0 : index
    %10 = vector.load %arg5[%c0_3, %c0_4] : memref<8x1xi32, #tpu.memory_space<vmem>>, vector<8x1xi32>
    %c0_5 = arith.constant 0 : index
    %c0_6 = arith.constant 0 : index
    %11 = vector.load %arg6[%c0_5, %c0_6] : memref<1x8xi32, #tpu.memory_space<vmem>>, vector<1x8xi32>
    %12 = vector.broadcast %10 : vector<8x1xi32> to vector<8x8xi32>
    %13 = vector.broadcast %11 : vector<1x8xi32> to vector<8x8xi32>
    %14 = arith.cmpi eq, %12, %13 : vector<8x8xi32>
    %15 = arith.extui %14 : vector<8x8xi1> to vector<8x8xi32>
    %16 = arith.sitofp %15 : vector<8x8xi32> to vector<8x8xf32>
    %17 = arith.cmpi eq, %1, %3 : i32
    %cst_7 = arith.constant 1.000000e+00 : f32
    %cst_8 = arith.constant 2.000000e+00 : f32
    %18 = arith.select %17, %cst_7, %cst_8 : f32
    %c0_9 = arith.constant 0 : index
    %c0_10 = arith.constant 0 : index
    %19 = vector.load %arg8[%c0_9, %c0_10] : memref<8x1xf32, #tpu.memory_space<vmem>>, vector<8x1xf32>
    %cst_11 = arith.constant dense<0.000000e+00> : vector<8xf32>
    %20 = vector.multi_reduction <add>, %9, %cst_11 [1] : vector<8x8xf32> to vector<8xf32>
    %21 = vector.shape_cast %20 : vector<8xf32> to vector<8x1xf32>
    %22 = vector.broadcast %18 : f32 to vector<8x1xf32>
    %23 = arith.mulf %22, %21 : vector<8x1xf32>
    %24 = arith.addf %19, %23 : vector<8x1xf32>
    %c0_12 = arith.constant 0 : index
    %c0_13 = arith.constant 0 : index
    %25 = vector.load %arg8[%c0_12, %c0_13] : memref<8x1xf32, #tpu.memory_space<vmem>>, vector<8x1xf32>
    tpu.vector_store %arg8[%c0_12, %c0_13], %24 {strides = array<i32>} : memref<8x1xf32, #tpu.memory_space<vmem>>, vector<8x1xf32>,
    %c0_14 = arith.constant 0 : index
    %c0_15 = arith.constant 0 : index
    %26 = vector.load %arg9[%c0_14, %c0_15] : memref<8x1xf32, #tpu.memory_space<vmem>>, vector<8x1xf32>
    %27 = arith.mulf %9, %16 : vector<8x8xf32>
    %cst_16 = arith.constant dense<0.000000e+00> : vector<8xf32>
    %28 = vector.multi_reduction <add>, %27, %cst_16 [1] : vector<8x8xf32> to vector<8xf32>
    %29 = vector.shape_cast %28 : vector<8xf32> to vector<8x1xf32>
    %30 = vector.broadcast %18 : f32 to vector<8x1xf32>
    %31 = arith.mulf %30, %29 : vector<8x1xf32>
    %32 = arith.addf %26, %31 : vector<8x1xf32>
    %c0_17 = arith.constant 0 : index
    %c0_18 = arith.constant 0 : index
    %33 = vector.load %arg9[%c0_17, %c0_18] : memref<8x1xf32, #tpu.memory_space<vmem>>, vector<8x1xf32>
    tpu.vector_store %arg9[%c0_17, %c0_18], %32 {strides = array<i32>} : memref<8x1xf32, #tpu.memory_space<vmem>>, vector<8x1xf32>,
    %c0_i32_19 = arith.constant 0 : i32
    %34 = arith.cmpi eq, %3, %c0_i32_19 : i32
    %35 = arith.extui %34 : i1 to i32
    %c0_i32_20 = arith.constant 0 : i32
    %36 = arith.cmpi ne, %35, %c0_i32_20 : i32
    scf.if %36 {
      %c0_21 = arith.constant 0 : index
      %c0_22 = arith.constant 0 : index
      %37 = vector.load %arg8[%c0_21, %c0_22] : memref<8x1xf32, #tpu.memory_space<vmem>>, vector<8x1xf32>
      %38 = vector.shape_cast %37 : vector<8x1xf32> to vector<1x8x1xf32>
      %cst_23 = arith.constant dense<0.000000e+00> : vector<1xf32>
      %39 = vector.multi_reduction <add>, %38, %cst_23 [1, 2] : vector<1x8x1xf32> to vector<1xf32>
      %40 = vector.shape_cast %39 : vector<1xf32> to vector<1x1x1xf32>
      %41 = vector.extract %40[0, 0, 0] : f32 from vector<1x1x1xf32>
      %c0_24 = arith.constant 0 : index
      %c0_25 = arith.constant 0 : index
      %42 = vector.load %arg9[%c0_24, %c0_25] : memref<8x1xf32, #tpu.memory_space<vmem>>, vector<8x1xf32>
      %43 = vector.shape_cast %42 : vector<8x1xf32> to vector<1x8x1xf32>
      %cst_26 = arith.constant dense<0.000000e+00> : vector<1xf32>
      %44 = vector.multi_reduction <add>, %43, %cst_26 [1, 2] : vector<1x8x1xf32> to vector<1xf32>
      %45 = vector.shape_cast %44 : vector<1xf32> to vector<1x1x1xf32>
      %46 = vector.extract %45[0, 0, 0] : f32 from vector<1x1x1xf32>
      %47 = tpu.iota {dimensions = array<i32: 0>} : vector<8x128xi32>
      %c0_i32_27 = arith.constant 0 : i32
      %48 = vector.broadcast %c0_i32_27 : i32 to vector<8x128xi32>
      %49 = arith.cmpi eq, %47, %48 : vector<8x128xi32>
      %c1_i32 = arith.constant 1 : i32
      %50 = vector.broadcast %c1_i32 : i32 to vector<8x128xi32>
      %51 = arith.cmpi eq, %47, %50 : vector<8x128xi32>
      %cst_28 = arith.constant 0.000000e+00 : f32
      %52 = vector.broadcast %46 : f32 to vector<8x128xf32>
      %53 = vector.broadcast %cst_28 : f32 to vector<8x128xf32>
      %54 = arith.select %51, %52, %53 : vector<8x128xi1>, vector<8x128xf32>
      %55 = vector.broadcast %41 : f32 to vector<8x128xf32>
      %56 = arith.select %49, %55, %54 : vector<8x128xi1>, vector<8x128xf32>
      %c0_29 = arith.constant 0 : index
      %c0_30 = arith.constant 0 : index
      %c0_31 = arith.constant 0 : index
      %57 = vector.load %arg7[%c0_29, %c0_30, %c0_31] : memref<1x8x128xf32, #tpu.memory_space<vmem>>, vector<1x8x128xf32>
      %58 = vector.shape_cast %57 : vector<1x8x128xf32> to vector<8x128xf32>
      %59 = vector.shape_cast %56 : vector<8x128xf32> to vector<1x8x128xf32>
      tpu.vector_store %arg7[%c0_29, %c0_30, %c0_31], %59 {strides = array<i32>} : memref<1x8x128xf32, #tpu.memory_space<vmem>>, vector<1x8x128xf32>,
    } else {
    }
    return
  }
  func.func @transform_0(%arg0: i32, %arg1: memref<1xi32, #tpu.memory_space<smem>>, %arg2: memref<1xi32, #tpu.memory_space<smem>>) -> (i32, i32) {
    %0 = arith.index_cast %arg0 : i32 to index
    %1 = memref.load %arg1[%0] : memref<1xi32, #tpu.memory_space<smem>>
    %c0_i32 = arith.constant 0 : i32
    %c0_i32_0 = arith.constant 0 : i32
    return %1, %c0_i32 : i32, i32
  }
  func.func @transform_1(%arg0: i32, %arg1: memref<1xi32, #tpu.memory_space<smem>>, %arg2: memref<1xi32, #tpu.memory_space<smem>>) -> (i32, i32) {
    %0 = arith.index_cast %arg0 : i32 to index
    %1 = memref.load %arg2[%0] : memref<1xi32, #tpu.memory_space<smem>>
    %c0_i32 = arith.constant 0 : i32
    %c0_i32_0 = arith.constant 0 : i32
    return %c0_i32, %1 : i32, i32
  }
  func.func @transform_2(%arg0: i32, %arg1: memref<1xi32, #tpu.memory_space<smem>>, %arg2: memref<1xi32, #tpu.memory_space<smem>>) -> (i32, i32) {
    %0 = arith.index_cast %arg0 : i32 to index
    %1 = memref.load %arg1[%0] : memref<1xi32, #tpu.memory_space<smem>>
    %c0_i32 = arith.constant 0 : i32
    %c0_i32_0 = arith.constant 0 : i32
    return %1, %c0_i32 : i32, i32
  }
  func.func @transform_3(%arg0: i32, %arg1: memref<1xi32, #tpu.memory_space<smem>>, %arg2: memref<1xi32, #tpu.memory_space<smem>>) -> (i32, i32) {
    %0 = arith.index_cast %arg0 : i32 to index
    %1 = memref.load %arg2[%0] : memref<1xi32, #tpu.memory_space<smem>>
    %c0_i32 = arith.constant 0 : i32
    %c0_i32_0 = arith.constant 0 : i32
    return %c0_i32, %1 : i32, i32
  }
  func.func @transform_4(%arg0: i32, %arg1: memref<1xi32, #tpu.memory_space<smem>>, %arg2: memref<1xi32, #tpu.memory_space<smem>>) -> (i32, i32, i32) {
    %0 = arith.index_cast %arg0 : i32 to index
    %1 = memref.load %arg1[%0] : memref<1xi32, #tpu.memory_space<smem>>
    %c0_i32 = arith.constant 0 : i32
    %c0_i32_0 = arith.constant 0 : i32
    %c0_i32_1 = arith.constant 0 : i32
    return %1, %c0_i32, %c0_i32_0 : i32, i32, i32
  }
}

</mosaic_0001>

<llo_original>
// kernel: tpu_custom_call.1
$region0: #{tpu_custom_call.1}
  #allocation0 [shape = 'u32[]', space=smem, size = 0x4, offset = 0x4, fixed_abs, tag = 'smem constant byte address 0x4 - core index']
  #allocation1 [shape = 'u32[72,128]{1,0:T(1,128)}', space=vmem, size = 0x9000, scoped, tag = 'internal scratch']
  #allocation2 [shape = 'f32[8,1]{1,0:T(8,128)}', space=vmem, size = 0x1000, scoped, tag = 'scratch operand']
  #allocation3 [shape = 'f32[8,1]{1,0:T(8,128)}', space=vmem, size = 0x1000, scoped, tag = 'scratch operand']
  #allocation4 [shape = 's32[1]{0}', space=sflag, size = 0x4, scoped, tag = 'scoped memory for tpu_custom_call.1']
  #allocation5 [shape = 's32[1]{0:T(128)S(6)}', space=smem, size = 0x200, scoped, tag = 'prefetched SMEM operand 0']
  #allocation6 [shape = 's32[1]{0:T(128)S(6)}', space=smem, size = 0x200, scoped, tag = 'prefetched SMEM operand 1']
  %s0 = inlined_call_operand.<no memory space> [shape: s32[1], index: 0, kind: input, shape index: {}]
  %s1 = inlined_call_operand.<no memory space> [shape: s32[1], index: 1, kind: input, shape index: {}]
  %s2 = inlined_call_operand.vmem [shape: bf16[8,32], index: 2, kind: input, shape index: {}]
  %s3 = inlined_call_operand.vmem [shape: bf16[32,8], index: 3, kind: input, shape index: {}]
  %s4 = inlined_call_operand.vmem [shape: s32[8,1], index: 4, kind: input, shape index: {}]
  %s5 = inlined_call_operand.vmem [shape: s32[1,8], index: 5, kind: input, shape index: {}]
  %s6 = inlined_call_operand.hbm [shape: f32[1,8,128], index: 6, kind: output, shape index: {}]
  %s7 = sld [smem:[#allocation0]]
  $region34: #{tpu_custom_call.1} parent=0
    _
  %s9 = ssub.s32 1, %s7
  %s10 = scalar_select 0, %s9, %s7
  %11 = sst [smem:[#allocation5]] %s0
  %12 = sst [smem:[#allocation6]] %s1
  $region1: #{tpu_custom_call.1} parent=0
    #allocation7 [shape = 'u8[4096]{0}', space=vmem, size = 0x1000, scoped, tag = 'output window, operand 0, single buffered']
    #allocation8 [shape = 's32[1]{0}', space=sflag, size = 0x4, scoped, tag = 'scoped memory for tpu_custom_call.1']
    %13 = vsyncpa [#allocation8], 0
    // Predicated region
    $region2: #{tpu_custom_call.1} parent=1 // pred_check
      _
    $region3: #{tpu_custom_call.1} parent=1 // pred_check_branch
      %15 = sbr.rel (0) target = $region5
    $region4: #{tpu_custom_call.1} parent=1 // pred_region
      %s16 = sld [smem:[#allocation5]]
      %p17 = scmp.lt.s32.totalorder %s16, 0
      %s18 = scalar_select %p17, %s16, 0
      %s19 = smul.addr %s18, 4
      %s20 = scalar_lea.vmem %s2, %s19
      %s21 = sld [smem:[#allocation5]]
    $region5: #{tpu_custom_call.1} parent=1 // pred_fallthru
      _
    // Predicated region
    $region6: #{tpu_custom_call.1} parent=1 // pred_check
      _
    $region7: #{tpu_custom_call.1} parent=1 // pred_check_branch
      %23 = sbr.rel (0) target = $region9
    $region8: #{tpu_custom_call.1} parent=1 // pred_region
      %s24 = sld [smem:[#allocation6]]
      %p25 = scmp.lt.s32.totalorder %s24, 0
      %s26 = scalar_select %p25, %s24, 0
      %s27 = smul.addr %s26, 4
      %s28 = scalar_lea.vmem %s3, %s27
      %s29 = sld [smem:[#allocation6]]
    $region9: #{tpu_custom_call.1} parent=1 // pred_fallthru
      _
    // Predicated region
    $region10: #{tpu_custom_call.1} parent=1 // pred_check
      _
    $region11: #{tpu_custom_call.1} parent=1 // pred_check_branch
      %31 = sbr.rel (0) target = $region13
    $region12: #{tpu_custom_call.1} parent=1 // pred_region
      %s32 = sld [smem:[#allocation5]]
      %p33 = scmp.lt.s32.totalorder %s32, 0
      %s34 = scalar_select %p33, %s32, 0
      %s35 = smul.addr %s34, 8
      %s36 = scalar_lea.vmem %s4, %s35
      %s37 = sld [smem:[#allocation5]]
    $region13: #{tpu_custom_call.1} parent=1 // pred_fallthru
      _
    // Predicated region
    $region14: #{tpu_custom_call.1} parent=1 // pred_check
      _
    $region15: #{tpu_custom_call.1} parent=1 // pred_check_branch
      %39 = sbr.rel (0) target = $region17
    $region16: #{tpu_custom_call.1} parent=1 // pred_region
      %s40 = sld [smem:[#allocation6]]
      %p41 = scmp.lt.s32.totalorder %s40, 0
      %s42 = scalar_select %p41, %s40, 0
      %s43 = scalar_lea.vmem %s5, %s42
      %s44 = sld [smem:[#allocation6]]
    $region17: #{tpu_custom_call.1} parent=1 // pred_fallthru
      _
    %s45 = sld [smem:[#allocation5]]
    %p46 = scmp.lt.s32.totalorder %s45, 0
    %s47 = scalar_select %p46, %s45, 0
    %s48 = smul.addr %s47, 4
    %s49 = scalar_lea.vmem %s2, %s48
    %s50 = sld [smem:[#allocation6]]
    %p51 = scmp.lt.s32.totalorder %s50, 0
    %s52 = scalar_select %p51, %s50, 0
    %s53 = smul.addr %s52, 4
    %s54 = scalar_lea.vmem %s3, %s53
    %s55 = sld [smem:[#allocation5]]
    %p56 = scmp.lt.s32.totalorder %s55, 0
    %s57 = scalar_select %p56, %s55, 0
    %s58 = smul.addr %s57, 8
    %s59 = scalar_lea.vmem %s4, %s58
    %s60 = sld [smem:[#allocation6]]
    %p61 = scmp.lt.s32.totalorder %s60, 0
    %s62 = scalar_select %p61, %s60, 0
    %s63 = scalar_lea.vmem %s5, %s62
    %s64 = sld [smem:[#allocation5]]
    %p65 = scmp.lt.s32.totalorder %s64, 0
    %s66 = scalar_select %p65, %s64, 0
    %s67 = smul.addr %s66, 4
    %s68 = scalar_lea.vmem %s2, %s67
    %s69 = sld [smem:[#allocation5]]
    %s70 = sld [smem:[#allocation6]]
    %p71 = scmp.lt.s32.totalorder %s70, 0
    %s72 = scalar_select %p71, %s70, 0
    %s73 = smul.addr %s72, 4
    %s74 = scalar_lea.vmem %s3, %s73
    %s75 = sld [smem:[#allocation6]]
    %s76 = sld [smem:[#allocation5]]
    %p77 = scmp.lt.s32.totalorder %s76, 0
    %s78 = scalar_select %p77, %s76, 0
    %s79 = smul.addr %s78, 8
    %s80 = scalar_lea.vmem %s4, %s79
    %s81 = sld [smem:[#allocation5]]
    %s82 = sld [smem:[#allocation6]]
    %p83 = scmp.lt.s32.totalorder %s82, 0
    %s84 = scalar_select %p83, %s82, 0
    %s85 = scalar_lea.vmem %s5, %s84
    %s86 = sld [smem:[#allocation6]]
    %s87 = sld [smem:[#allocation5]]
    %s89 = sld [smem:[#allocation5]]
    %s90 = sld [smem:[#allocation6]]
    %p91 = scmp.eq.s32.totalorder %s90, %s89
    // Predicated region
    $region18: #{tpu_custom_call.1} parent=1 // pred_check
      %p92 = pneg %p91
    $region19: #{tpu_custom_call.1} parent=1 // pred_check_branch
      %94 = sbr.rel (%p92) target = $region21
    $region20: #{tpu_custom_call.1} parent=1 // pred_region
      %vm95 = vcmask 7168
      %96 = vst.msk [vmem:[#allocation2] sm:$0xff] %vm95, 0.0
      %97 = vst.msk [vmem:[#allocation3] sm:$0xff] %vm95, 0.0
    $region21: #{tpu_custom_call.1} parent=1 // pred_fallthru
      _
    %v98 = vld [vmem:[%s68] sm:$0xf]
    %v99 = vld [vmem:[%s74] sm:$0xf]
    %v100 = vld [vmem:[%s74 + $0x4] sm:$0xf]
    %v101 = vld [vmem:[%s74 + $0x8] sm:$0xf]
    %v102 = vld [vmem:[%s74 + $0xc] sm:$0xf]
    %v107 = vunpack.c.l.b16 %v99
    %v108 = vunpack.c.l.b16 %v100
    %v109 = vunpack.c.l.b16 %v101
    %v110 = vunpack.c.l.b16 %v102
    %v111 = vpack.c.b16 %v108, %v107
    %v112 = vpack.c.b16 %v110, %v109
    %vm115 = vcmask 261120
    %v117 = vsel %vm115, %v98, 0
    %119 = vmatpush.bf16.msra.mxu0 0
    %120 = vmatpush.bf16.msra.mxu0 0
    %121 = vmatpush.bf16.msra.mxu0 0
    %122 = vmatpush.bf16.msra.mxu0 0
    %123 = vmatpush.bf16.msra.mxu0 0
    %124 = vmatpush.bf16.msra.mxu0 0
    %125 = vmatpush.bf16.msra.mxu0 %v112
    %126 = vmatpush.bf16.msra.mxu0 %v111
    %127 = vmatmul.bf16.gmra.mxu0 %v117
    %v128 = vpop.f32.mrf.mxu0
    %v129 = vadd.f32 0.0, %v128
    %v130 = vpop.f32.mrf.mxu0
    %131 = vdwg.mxu0
    %v132 = vld [vmem:[%s80] sm:$0xff]
    %v133 = vld [vmem:[%s85] sm:$0x1]
    %134 = vset.pattern.permute.xlu0 0
    %135 = vperm.xlu0 %134, %v132
    %v136 = vpop.permute.xlu0 %135
    %v137 = vperm.slane %v133, 0
    %vm138 = vcmp.eq.s32.totalorder %v136, %v137
    %v139 = vsel %vm138, 1, 0
    %v140 = vcvt.s32.f32 %v139
    %p141 = scmp.eq.s32.totalorder %s89, %s90
    %s142 = scalar_select %p141, 1.0, 2.0
    %v143 = vld [vmem:[#allocation2] sm:$0xff]
    %vm144 = vcmask 64512
    %v145 = vsel %vm144, %v129, 0.0
    %146 = vadd.xlane.f32.xlu0 %v145
    %v147 = vpop.xlane.xlu0 %146
    %v148 = vstv %s142
    %v149 = vmul.f32 %v148, %v147
    %v150 = vadd.f32 %v143, %v149
    %vm151 = vcmask 7168
    %152 = vst.msk [vmem:[#allocation2] sm:$0xff] %vm151, %v150
    %v153 = vld [vmem:[#allocation3] sm:$0xff]
    %v154 = vmul.f32 %v129, %v140
    %v155 = vsel %vm144, %v154, 0.0
    %156 = vadd.xlane.f32.xlu0 %v155
    %v157 = vpop.xlane.xlu0 %156
    %v158 = vmul.f32 %v148, %v157
    %v159 = vadd.f32 %v153, %v158
    %160 = vst.msk [vmem:[#allocation3] sm:$0xff] %vm151, %v159
    %p161 = scmp.eq.s32.totalorder %s90, 0
    // Predicated region
    $region22: #{tpu_custom_call.1} parent=1 // pred_check
      %p162 = pneg %p161
    $region23: #{tpu_custom_call.1} parent=1 // pred_check_branch
      %164 = sbr.rel (%p162) target = $region25
    $region24: #{tpu_custom_call.1} parent=1 // pred_region
      %v165 = vld [vmem:[#allocation2] sm:$0xff]
      %v166 = vsel %vm151, %v165, 0.0
      %167 = vadd.xlane.f32.xlu0 %v166
      %v168 = vpop.xlane.xlu0 %167
      %v169 = vrot.slane %v168, 4
      %v170 = vadd.f32 %v168, %v169
      %v171 = vrot.slane %v170, 2
      %v172 = vadd.f32 %v170, %v171
      %v173 = vrot.slane %v172, 1
      %v174 = vadd.f32 %v172, %v173
      %s175 = vtos %v174
      %v176 = vld [vmem:[#allocation3] sm:$0xff]
      %v177 = vsel %vm151, %v176, 0.0
      %178 = vadd.xlane.f32.xlu0 %v177
      %v179 = vpop.xlane.xlu0 %178
      %v180 = vrot.slane %v179, 4
      %v181 = vadd.f32 %v179, %v180
      %v182 = vrot.slane %v181, 2
      %v183 = vadd.f32 %v181, %v182
      %v184 = vrot.slane %v183, 1
      %v185 = vadd.f32 %v183, %v184
      %s186 = vtos %v185
      %v187 = vlaneseq
      %v188 = vshrl.u32 %v187, 7
      %vm189 = vcmp.eq.s32.totalorder %v188, 0
      %vm190 = vcmp.eq.s32.totalorder %v188, 1
      %v191 = vstv %s186
      %v192 = vsel %vm190, %v191, 0.0
      %v193 = vstv %s175
      %v194 = vsel %vm189, %v193, %v192
      %195 = vst [vmem:[#allocation7] sm:$0xff] %v194
    $region25: #{tpu_custom_call.1} parent=1 // pred_fallthru
      _
    // Predicated region
    $region26: #{tpu_custom_call.1} parent=1 // pred_check
      _
    $region27: #{tpu_custom_call.1} parent=1 // pred_check_branch
      %197 = sbr.rel (0) target = $region29
    $region28: #{tpu_custom_call.1} parent=1 // pred_region
      %s198 = sld [smem:[#allocation5]]
      %200 = vsyncadd [#allocation8], 0
      %s201 = smul.addr %s198, 8
      %s202 = scalar_lea.hbm %s6, %s201
      %s204 = sshll.u32 [#allocation7], 4
      %s205 = int_to_ptr.vmem [resolvable:$true] %s204
      %s206 = sshll.u32 %s202, 4
      %s207 = int_to_ptr.hbm [resolvable:$true] %s206
      %209 = dma.vmem_to_hbm [thread:$0]  %s205, 128, %s207, [#allocation8]
    $region29: #{tpu_custom_call.1} parent=1 // pred_fallthru
      _
    // Predicated region
    $region30: #{tpu_custom_call.1} parent=1 // pred_check
      _
    $region31: #{tpu_custom_call.1} parent=1 // pred_check_branch
      %211 = sbr.rel (0) target = $region33
    $region32: #{tpu_custom_call.1} parent=1 // pred_region
      %213 = dma.done [#allocation8], 128
    $region33: #{tpu_custom_call.1} parent=1 // pred_fallthru
      _
    %214 = vsyncpa [#allocation8], 1

</llo_original>
